<compile_context>
chip_gen: v7x
topology: tpu7x:2x2x1
jax: 0.10.0
libtpu: 0.0.40
codegen_flags: <defaults>
</compile_context>

<pallas_src>
import jax
import jax.numpy as jnp
from jax.experimental import pallas as pl
from jax.experimental.pallas import tpu as pltpu


# ----------------------------------------------------------------------------
# Helpers
# ----------------------------------------------------------------------------
def _round_up(v, m):
    return ((v + m - 1) // m) * m


def _vmem_budget_bytes():
    """Generation-aware VMEM budget: ~half of physical VMEM, capped at 64 MiB."""
    cap = 64 * 1024 * 1024
    try:
        info = pltpu.get_tpu_info()
        cap = int(getattr(info, "vmem_capacity_bytes", cap))
    except Exception:
        pass
    return min(cap // 2, 64 * 1024 * 1024)


# ----------------------------------------------------------------------------
# Pallas kernel: fused (cast -> 1x1-conv-as-matmul -> bias -> cast) per tile
# ----------------------------------------------------------------------------
def _make_conv1x1_kernel(compute_dtype):
    def kernel(w_ref, b_ref, x_ref, o_ref):
        # w_ref: (C_out, E)    caller dtype, cast to compute dtype in-reg
        # b_ref: (C_out, 1)    f32
        # x_ref: (Bb, E, ts)   caller dtype (cast fused here — no XLA cast pass)
        # o_ref: (Bb, C_out, ts) out dtype (spatial axis lane-dense)
        w = w_ref[...].astype(compute_dtype)
        bias = b_ref[...]
        for b in range(x_ref.shape[0]):          # small static unroll (Bb <= 8)
            acc = jnp.dot(w, x_ref[b].astype(compute_dtype),
                          preferred_element_type=jnp.float32)
            o_ref[b] = (acc + bias).astype(o_ref.dtype)
    return kernel


def conv1x1_transposed(x_bes, weight, bias, *,
                       compute_dtype=jnp.bfloat16,
                       out_dtype=None,
                       ts_target=8192,
                       min_grid_steps=4):
    """1x1 conv in native NCHW element order.

    x_bes : (B, E, S)   activations, S = NHp*NWp (any float dtype; cast in-kernel)
    weight: (C_out, E)  or (C_out, E, 1, 1)  (PyTorch Conv2d weight)
    bias  : (C_out,)
    returns (B, C_out, S) in `out_dtype` (default: x dtype)
    """
    B, E, S = x_bes.shape
    if weight.ndim == 4:
        weight = weight.reshape(weight.shape[0], weight.shape[1])
    C_out, E_w = weight.shape
    assert E == E_w, (E, E_w)
    out_dtype = x_bes.dtype if out_dtype is None else out_dtype

    x_bytes = jnp.dtype(x_bes.dtype).itemsize
    out_bytes = jnp.dtype(out_dtype).itemsize
    w_bytes = jnp.dtype(weight.dtype).itemsize

    vmem_budget = _vmem_budget_bytes()
    usable = max(int(0.8 * vmem_budget) - 2 * C_out * E * w_bytes, 1)

    if S < 128:
        # Small-S path: full-S block (sub-128 lanes unavoidable); amortize the
        # per-step overhead by processing several batch images per grid step.
        ts, n_stiles = S, 1
        per_b = 2 * S * (E * x_bytes + C_out * out_bytes)
        Bb = max(1, min(B, usable // max(per_b, 1), 8))
        if -(-B // Bb) < min_grid_steps:          # keep parallel steps for v7x
            Bb = max(1, -(-B // min(min_grid_steps, B)))
        n_btiles = -(-B // Bb)
    else:
        # Lane-dense path: one batch per step, big spatial tiles (multiple of
        # 128) sized to the VMEM budget, ragged last tile handled by masking.
        Bb = 1
        n_btiles = B
        per_lane = 2 * (E * x_bytes + C_out * out_bytes)
        ts = min(ts_target, max(128, usable // per_lane))
        if n_btiles < min_grid_steps:             # keep >= 4 steps for megacore
            want = -(-min_grid_steps // n_btiles)
            ts = min(ts, _round_up(-(-S // want), 128))
        if ts >= S:
            ts, n_stiles = S, 1
        else:
            ts = max(128, (ts // 128) * 128)
            n_stiles = -(-S // ts)

    b2 = bias.astype(jnp.float32).reshape(C_out, 1)

    kernel = _make_conv1x1_kernel(compute_dtype)
    y = pl.pallas_call(
        kernel,
        out_shape=jax.ShapeDtypeStruct((B, C_out, S), out_dtype),
        grid_spec=pltpu.PrefetchScalarGridSpec(
            num_scalar_prefetch=0,
            grid=(n_btiles, n_stiles),
            in_specs=[
                # Constant block index -> fetched once, not re-DMA'd per step.
                pl.BlockSpec((C_out, E), lambda bi, si: (0, 0)),
                pl.BlockSpec((C_out, 1), lambda bi, si: (0, 0)),
                pl.BlockSpec((Bb, E, ts), lambda bi, si: (bi, 0, si)),
            ],
            out_specs=pl.BlockSpec((Bb, C_out, ts), lambda bi, si: (bi, 0, si)),
        ),
        compiler_params=pltpu.CompilerParams(
            dimension_semantics=("parallel", "parallel"),
            vmem_limit_bytes=int(vmem_budget),
        ),
    )(weight, b2, x_bes)
    return y


# ----------------------------------------------------------------------------
# Module wrapper (PixelShuffle2D permute stays a single XLA transpose for now)
# ----------------------------------------------------------------------------
def single_conv_decoder_2d(raw_x, x, weight, bias, *, encoder_embed_dim,
                           patch_size, in_chans,
                           compute_dtype=jnp.bfloat16, out_dtype=None):
    """
    raw_x : (B, in_chans, H, W)              -- only used for its shape (NCHW)
    x     : reshapable to (B, E, NHp, NWp)   -- encoder tokens (NCHW element order)
    weight: (C_out, E) or (C_out, E, 1, 1) with C_out = patch_size**2 * in_chans
    bias  : (C_out,)
    returns (B, in_chans, H, W)  (NCHW, identical to the PyTorch module)
    """
    B, _, H, W = raw_x.shape
    p = patch_size
    NHp, NWp = H // p, W // p
    E = encoder_embed_dim
    S = NHp * NWp

    # Free reshape (same element order as the PyTorch x.reshape(B, E, NHp, NWp)).
    x_bes = x.reshape(B, E, S)

    y = conv1x1_transposed(x_bes, weight, bias,
                           compute_dtype=compute_dtype,
                           out_dtype=out_dtype)            # (B, C_out, S)

    # PixelShuffle2D: c_out = c*p*p + r*p + s -> pixel (h*p + r, w*p + s).
    # TODO(synk): fuse this permute into the kernel store (needs a minor-dim
    # 5-D transpose in VMEM, not reliably lowered by Mosaic today).
    y = y.reshape(B, in_chans, p, p, NHp, NWp)
    y = jnp.transpose(y, (0, 1, 4, 2, 5, 3))               # (B, C, Hb, r, Wb, s)
    return y.reshape(B, in_chans, NHp * p, NWp * p)


# ----------------------------------------------------------------------------
# Pure-JAX reference (mirrors the PyTorch module)
# ----------------------------------------------------------------------------
def _reference(raw_x, x, weight, bias, *, encoder_embed_dim, patch_size,
               in_chans, cast_dtype=None):
    B, _, H, W = raw_x.shape
    p = patch_size
    NHp, NWp = H // p, W // p
    E = encoder_embed_dim
    enc = x.reshape(B, E, NHp, NWp)
    xx = enc.astype(cast_dtype) if cast_dtype is not None else enc
    ww = weight.astype(cast_dtype) if cast_dtype is not None else weight
    y = jnp.einsum("behw,oe->bohw", xx, ww,
                   preferred_element_type=jnp.float32)
    y = (y + bias[None, :, None, None]).astype(x.dtype)
    C = in_chans
    y = y.reshape(B, C, p, p, NHp, NWp)
    y = jnp.transpose(y, (0, 1, 4, 2, 5, 3))
    return y.reshape(B, C, NHp * p, NWp * p)


# ----------------------------------------------------------------------------
if __name__ == "__main__":
    master_key = jax.random.PRNGKey(0)

    def run_case(B, in_chans, H, W, patch_size, E, key):
        NHp, NWp = H // patch_size, W // patch_size
        C_out = patch_size ** 2 * in_chans
        k_raw, k_x, k_w, k_b = jax.random.split(key, 4)
        raw_x = jax.random.normal(k_raw, (B, in_chans, H, W), dtype=jnp.float32)
        x = jax.random.normal(k_x, (B, E, NHp, NWp), dtype=jnp.float32)
        weight = 0.05 * jax.random.normal(k_w, (C_out, E), dtype=jnp.float32)
        bias = 0.01 * jax.random.normal(k_b, (C_out,), dtype=jnp.float32)

        out = single_conv_decoder_2d(
            raw_x, x, weight, bias,
            encoder_embed_dim=E, patch_size=patch_size, in_chans=in_chans)
        out = jax.block_until_ready(out)
        assert out.shape == (B, in_chans, H, W), out.shape

        ref_bf16 = _reference(raw_x, x, weight, bias, encoder_embed_dim=E,
                              patch_size=patch_size, in_chans=in_chans,
                              cast_dtype=jnp.bfloat16)
        ref_f32 = _reference(raw_x, x, weight, bias, encoder_embed_dim=E,
                             patch_size=patch_size, in_chans=in_chans,
                             cast_dtype=None)
        assert jnp.allclose(out, ref_bf16, atol=2e-3, rtol=2e-3), \
            "mismatch vs bf16-matched reference"
        assert jnp.allclose(out, ref_f32, atol=5e-2, rtol=5e-2), \
            "mismatch vs f32 reference"

    # Small-S path: S = 16 < 128 lanes (full-S block, batch-blocked grid).
    run_case(B=2, in_chans=3, H=16, W=16, patch_size=4, E=32,
             key=jax.random.fold_in(master_key, 0))
    # Lane-dense path: S = 16*18 = 288 >= 128 (128/256-lane tiles, ragged tail).
    run_case(B=2, in_chans=3, H=64, W=72, patch_size=4, E=64,
             key=jax.random.fold_in(master_key, 1))

    print("KERNEL_OK")
</pallas_src>

<mosaic_0001>
module attributes {stable_mosaic.version = 11 : i64} {
  func.func @kernel(%arg0: i32, %arg1: i32, %arg2: memref<48x32xf32, #tpu.memory_space<vmem>>, %arg3: memref<48x1xf32, #tpu.memory_space<vmem>>, %arg4: memref<1x32x16xf32, #tpu.memory_space<vmem>>, %arg5: memref<1x48x16xf32, #tpu.memory_space<vmem>>) attributes {dimension_semantics = [#tpu.dimension_semantics<parallel>, #tpu.dimension_semantics<parallel>], iteration_bounds = array<i64: 2, 1>, scalar_prefetch = 0 : i64, scratch_operands = 0 : i64, tpu.core_type = #tpu.core_type<tc>, window_params = [{pipeline_mode = #tpu.pipeline_mode<synchronous>, transform_indices = @transform_0, window_bounds = array<i64: 48, 32>}, {pipeline_mode = #tpu.pipeline_mode<synchronous>, transform_indices = @transform_1, window_bounds = array<i64: 48, 1>}, {transform_indices = @transform_2, window_bounds = array<i64: 1, 32, 16>}, {transform_indices = @transform_3, window_bounds = array<i64: 1, 48, 16>}]} {
    %c0 = arith.constant 0 : index
    %c0_0 = arith.constant 0 : index
    %0 = vector.load %arg2[%c0, %c0_0] : memref<48x32xf32, #tpu.memory_space<vmem>>, vector<48x32xf32>
    %1 = arith.truncf %0 : vector<48x32xf32> to vector<48x32xbf16>
    %c0_1 = arith.constant 0 : index
    %c0_2 = arith.constant 0 : index
    %2 = vector.load %arg3[%c0_1, %c0_2] : memref<48x1xf32, #tpu.memory_space<vmem>>, vector<48x1xf32>
    %c0_3 = arith.constant 0 : index
    %c0_4 = arith.constant 0 : index
    %c0_5 = arith.constant 0 : index
    %3 = vector.load %arg4[%c0_3, %c0_4, %c0_5] : memref<1x32x16xf32, #tpu.memory_space<vmem>>, vector<1x32x16xf32>
    %4 = vector.shape_cast %3 : vector<1x32x16xf32> to vector<32x16xf32>
    %5 = arith.truncf %4 : vector<32x16xf32> to vector<32x16xbf16>
    %cst = arith.constant dense<0.000000e+00> : vector<48x16xf32>
    %6 = tpu.matmul %1, %5, %cst {dimension_numbers = #tpu.dot_dimension_numbers<[1], [0], [0], [1], [0, 0, 1, 1], [], []>} : vector<48x32xbf16>, vector<32x16xbf16>, vector<48x16xf32> -> vector<48x16xf32>
    %7 = vector.broadcast %2 : vector<48x1xf32> to vector<48x16xf32>
    %8 = arith.addf %6, %7 : vector<48x16xf32>
    %c0_6 = arith.constant 0 : index
    %c0_7 = arith.constant 0 : index
    %c0_8 = arith.constant 0 : index
    %9 = vector.load %arg5[%c0_6, %c0_7, %c0_8] : memref<1x48x16xf32, #tpu.memory_space<vmem>>, vector<1x48x16xf32>
    %10 = vector.shape_cast %9 : vector<1x48x16xf32> to vector<48x16xf32>
    %11 = vector.shape_cast %8 : vector<48x16xf32> to vector<1x48x16xf32>
    tpu.vector_store %arg5[%c0_6, %c0_7, %c0_8], %11 {strides = array<i32>} : memref<1x48x16xf32, #tpu.memory_space<vmem>>, vector<1x48x16xf32>,
    return
  }
  func.func @transform_0(%arg0: i32, %arg1: i32) -> (i32, i32) {
    %c0_i32 = arith.constant 0 : i32
    %c0_i32_0 = arith.constant 0 : i32
    %c0_i32_1 = arith.constant 0 : i32
    return %c0_i32, %c0_i32_0 : i32, i32
  }
  func.func @transform_1(%arg0: i32, %arg1: i32) -> (i32, i32) {
    %c0_i32 = arith.constant 0 : i32
    %c0_i32_0 = arith.constant 0 : i32
    %c0_i32_1 = arith.constant 0 : i32
    return %c0_i32, %c0_i32_0 : i32, i32
  }
  func.func @transform_2(%arg0: i32, %arg1: i32) -> (i32, i32, i32) {
    %c0_i32 = arith.constant 0 : i32
    %c0_i32_0 = arith.constant 0 : i32
    return %arg0, %c0_i32, %arg1 : i32, i32, i32
  }
  func.func @transform_3(%arg0: i32, %arg1: i32) -> (i32, i32, i32) {
    %c0_i32 = arith.constant 0 : i32
    %c0_i32_0 = arith.constant 0 : i32
    return %arg0, %c0_i32, %arg1 : i32, i32, i32
  }
}

</mosaic_0001>

<llo_original>
// kernel: tpu_custom_call.1
$region0: #{tpu_custom_call.1}
  #allocation0 [shape = 'u32[]', space=smem, size = 0x4, offset = 0x4, fixed_abs, tag = 'smem constant byte address 0x4 - core index']
  #allocation1 [shape = 'u32[144,128]{1,0:T(1,128)}', space=vmem, size = 0x12000, scoped, tag = 'internal scratch']
  %s0 = inlined_call_operand.vmem [shape: f32[48,32], index: 0, kind: input, shape index: {}]
  %s1 = inlined_call_operand.vmem [shape: f32[48,1], index: 1, kind: input, shape index: {}]
  %s2 = inlined_call_operand.vmem [shape: f32[2,32,16], index: 2, kind: input, shape index: {}]
  %s3 = inlined_call_operand.vmem [shape: f32[2,48,16], index: 3, kind: output, shape index: {}]
  %s4 = sld [smem:[#allocation0]]
  $region45: #{tpu_custom_call.1} parent=0
    _
  %s6 = ssub.s32 1, %s4
  %s7 = scalar_select 0, %s6, %s4
  loop: start=0, step=1, limit=4
  $region2: #{tpu_custom_call.1} parent=0 // loop_pre_header
    _
  $region3: #{tpu_custom_call.1} parent=0 // loop_header
    %s9 = sphi 0, %s13
    %p10 = scmp.ge.s32.totalorder %s9, 4
    %s16 = sphi 0, %s28
    %s17 = sphi 0, %s24
    %s18 = sphi 0, %s16
    %s19 = sphi 0, %s17
    %s20 = sphi 0, %s18
    %s21 = sphi 0, %s19
    %s29 = sphi 0, %s29
    %s31 = sphi 0, %s29
    %s32 = sphi 0, %s31
    %s46 = sphi 0, %s32
    %s50 = sphi 0, %s50
    %s52 = sphi 0, %s50
    %s53 = sphi 0, %s52
    %s67 = sphi 0, %s53
    %s75 = sphi 0, %s77
    %s78 = sphi 0, %s75
    %s79 = sphi 0, %s78
    %s95 = sphi 0, %s79
    %s103 = sphi 0, %s105
    %s106 = sphi 0, %s103
    %s107 = sphi 0, %s106
    %s123 = sphi 0, %s107
  $region4: #{tpu_custom_call.1} parent=0 // loop_header_branch
    %12 = sbr.rel (%p10) target = $region8
  $region5: #{tpu_custom_call.1} parent=0 // loop_body
    %s14 = ssub.s32 %s9, 1
    %s15 = ssub.s32 %s9, 2
    %s22 = sadd.s32 1, %s17
    %p23 = scmp.ge.s32.totalorder %s22, 1
    %s24 = scalar_select %p23, 0, %s22
    %s25 = sadd.s32 1, %s16
    %s26 = scalar_select %p23, %s25, %s16
    %p27 = scmp.ge.s32.totalorder %s26, 2
    %s28 = scalar_select %p27, 0, %s26
    %s30 = sadd.s32 %s29, 1
    %p33 = scmp.eq.s32.totalorder %s9, 1
    %p34 = scmp.ne.s32.totalorder %s29, %s31
    %p35 = scmp.eq.s32.totalorder %s9, 0
    %p36 = por %p34, %p35
    %p37 = scmp.ne.s32.totalorder %s29, %s31
    %p38 = scmp.eq.s32.totalorder %s14, 1
    %p39 = por %p37, %p38
    %p40 = scmp.ne.s32.totalorder %s31, %s32
    %p41 = scmp.eq.s32.totalorder %s14, 0
    %p42 = por %p40, %p41
    %p43 = scmp.ne.s32.totalorder %s31, %s32
    %p44 = scmp.eq.s32.totalorder %s15, 1
    %p45 = por %p43, %p44
    %p47 = scmp.ne.s32.totalorder %s32, %s46
    %p48 = scmp.eq.s32.totalorder %s15, 0
    %p49 = por %p47, %p48
    %s51 = sadd.s32 %s50, 1
    %p54 = scmp.eq.s32.totalorder %s9, 1
    %p55 = scmp.ne.s32.totalorder %s50, %s52
    %p56 = scmp.eq.s32.totalorder %s9, 0
    %p57 = por %p55, %p56
    %p58 = scmp.ne.s32.totalorder %s50, %s52
    %p59 = scmp.eq.s32.totalorder %s14, 1
    %p60 = por %p58, %p59
    %p61 = scmp.ne.s32.totalorder %s52, %s53
    %p62 = scmp.eq.s32.totalorder %s14, 0
    %p63 = por %p61, %p62
    %p64 = scmp.ne.s32.totalorder %s52, %s53
    %p65 = scmp.eq.s32.totalorder %s15, 1
    %p66 = por %p64, %p65
    %p68 = scmp.ne.s32.totalorder %s53, %s67
    %p69 = scmp.eq.s32.totalorder %s15, 0
    %p70 = por %p68, %p69
    %s71 = ssub.s32 %s16, %s28
    %s72 = ssub.s32 %s17, %s24
    %s73 = sor.u32 %s71, %s72
    %p74 = scmp.eq.s32.totalorder %s73, 0
    %s76 = sadd.s32 %s75, 1
    %s77 = scalar_select %p74, %s75, %s76
    %p80 = pneg %p74
    %p81 = scmp.eq.s32.totalorder %s9, 1
    %p82 = por %p80, %p81
    %p83 = scmp.ne.s32.totalorder %s75, %s78
    %p84 = scmp.eq.s32.totalorder %s9, 0
    %p85 = por %p83, %p84
    %p86 = scmp.ne.s32.totalorder %s75, %s78
    %p87 = scmp.eq.s32.totalorder %s14, 1
    %p88 = por %p86, %p87
    %p89 = scmp.ne.s32.totalorder %s78, %s79
    %p90 = scmp.eq.s32.totalorder %s14, 0
    %p91 = por %p89, %p90
    %p92 = scmp.ne.s32.totalorder %s78, %s79
    %p93 = scmp.eq.s32.totalorder %s15, 1
    %p94 = por %p92, %p93
    %p96 = scmp.ne.s32.totalorder %s79, %s95
    %p97 = scmp.eq.s32.totalorder %s15, 0
    %p98 = por %p96, %p97
    %s99 = ssub.s32 %s16, %s28
    %s100 = ssub.s32 %s17, %s24
    %s101 = sor.u32 %s99, %s100
    %p102 = scmp.eq.s32.totalorder %s101, 0
    %s104 = sadd.s32 %s103, 1
    %s105 = scalar_select %p102, %s103, %s104
    %p108 = pneg %p102
    %p109 = scmp.eq.s32.totalorder %s9, 1
    %p110 = por %p108, %p109
    %p111 = scmp.ne.s32.totalorder %s103, %s106
    %p112 = scmp.eq.s32.totalorder %s9, 0
    %p113 = por %p111, %p112
    %p114 = scmp.ne.s32.totalorder %s103, %s106
    %p115 = scmp.eq.s32.totalorder %s14, 1
    %p116 = por %p114, %p115
    %p117 = scmp.ne.s32.totalorder %s106, %s107
    %p118 = scmp.eq.s32.totalorder %s14, 0
    %p119 = por %p117, %p118
    %p120 = scmp.ne.s32.totalorder %s106, %s107
    %p121 = scmp.eq.s32.totalorder %s15, 1
    %p122 = por %p120, %p121
    %p124 = scmp.ne.s32.totalorder %s107, %s123
    %p125 = scmp.eq.s32.totalorder %s15, 0
    %p126 = por %p124, %p125
    %p127 = scmp.le.s32.totalorder 1, %s9
    %p128 = scmp.lt.s32.totalorder %s9, 3
    %p129 = pnand %p127, %p128
    %p130 = pneg %p129
    // Predicated region
    $region9: #{tpu_custom_call.1} parent=5 // pred_check
      _
    $region10: #{tpu_custom_call.1} parent=5 // pred_check_branch
      %132 = sbr.rel (%p129) target = $region12
    $region11: #{tpu_custom_call.1} parent=5 // pred_region
      %s133 = ssub.s32 %s9, 1
      // Predicated region
      $region13: #{tpu_custom_call.1} parent=11 // pred_check
        %p134 = pneg %p42
      $region14: #{tpu_custom_call.1} parent=11 // pred_check_branch
        %136 = sbr.rel (%p134) target = $region16
      $region15: #{tpu_custom_call.1} parent=11 // pred_region
        _
      $region16: #{tpu_custom_call.1} parent=11 // pred_fallthru
        _
      // Predicated region
      $region17: #{tpu_custom_call.1} parent=11 // pred_check
        %p137 = pneg %p63
      $region18: #{tpu_custom_call.1} parent=11 // pred_check_branch
        %139 = sbr.rel (%p137) target = $region20
      $region19: #{tpu_custom_call.1} parent=11 // pred_region
        _
      $region20: #{tpu_custom_call.1} parent=11 // pred_fallthru
        _
    $region12: #{tpu_custom_call.1} parent=5 // pred_fallthru
      _
    %p140 = scmp.lt.s32.totalorder %s9, 2
    // Predicated region
    $region21: #{tpu_custom_call.1} parent=5 // pred_check
      %p141 = pneg %p140
    $region22: #{tpu_custom_call.1} parent=5 // pred_check_branch
      %143 = sbr.rel (%p141) target = $region24
    $region23: #{tpu_custom_call.1} parent=5 // pred_region
      // Predicated region
      $region25: #{tpu_custom_call.1} parent=23 // pred_check
        %p144 = pneg %p85
      $region26: #{tpu_custom_call.1} parent=23 // pred_check_branch
        %146 = sbr.rel (%p144) target = $region28
      $region27: #{tpu_custom_call.1} parent=23 // pred_region
        %p147 = scmp.lt.s32.totalorder %s16, 1
        %s148 = scalar_select %p147, %s16, 1
        %p149 = scmp.lt.s32.totalorder %s17, 0
        %s150 = scalar_select %p149, %s17, 0
        %s151 = smul.addr %s148, 4
        %s152 = sadd.s32 %s150, %s151
        %s153 = smul.addr %s152, 8
        %s154 = scalar_lea.vmem %s2, %s153
      $region28: #{tpu_custom_call.1} parent=23 // pred_fallthru
        _
    $region24: #{tpu_custom_call.1} parent=5 // pred_fallthru
      _
    %p155 = scmp.le.s32.totalorder 1, %s9
    %p156 = scmp.lt.s32.totalorder %s9, 3
    %p157 = pnand %p155, %p156
    %p158 = pneg %p157
    // Predicated region
    $region29: #{tpu_custom_call.1} parent=5 // pred_check
      _
    $region30: #{tpu_custom_call.1} parent=5 // pred_check_branch
      %160 = sbr.rel (%p157) target = $region32
    $region31: #{tpu_custom_call.1} parent=5 // pred_region
      %s161 = ssub.s32 %s9, 1
      %p162 = pneg %p42
      %p163 = pneg %p39
      %p164 = pneg %p63
      %p165 = pneg %p60
      %p166 = scmp.lt.s32.totalorder %s18, 1
      %s167 = scalar_select %p166, %s18, 1
      %p168 = scmp.lt.s32.totalorder %s19, 0
      %s169 = scalar_select %p168, %s19, 0
      %s170 = smul.addr %s167, 4
      %s171 = sadd.s32 %s169, %s170
      %s172 = smul.addr %s171, 8
      %s173 = scalar_lea.vmem %s2, %s172
      %p174 = pneg %p91
      %p175 = pneg %p88
      %p176 = pneg %p119
      %p177 = pneg %p116
      %p178 = scmp.lt.s32.totalorder %s18, 1
      %s179 = scalar_select %p178, %s18, 1
      %p180 = scmp.lt.s32.totalorder %s19, 0
      %s181 = scalar_select %p180, %s19, 0
      %s182 = smul.addr %s179, 6
      %s183 = sadd.s32 %s181, %s182
      %s184 = smul.addr %s183, 8
      %s185 = scalar_lea.vmem %s3, %s184
      %p186 = scmp.lt.s32.totalorder %s18, 1
      %s187 = scalar_select %p186, %s18, 1
      %p188 = scmp.lt.s32.totalorder %s19, 0
      %s189 = scalar_select %p188, %s19, 0
      %s190 = smul.addr %s187, 4
      %s191 = sadd.s32 %s189, %s190
      %s192 = smul.addr %s191, 8
      %s193 = scalar_lea.vmem %s2, %s192
      %p194 = scmp.lt.s32.totalorder %s18, 1
      %s195 = scalar_select %p194, %s18, 1
      %p196 = scmp.lt.s32.totalorder %s19, 0
      %s197 = scalar_select %p196, %s19, 0
      %s198 = smul.addr %s195, 6
      %s199 = sadd.s32 %s197, %s198
      %s200 = smul.addr %s199, 8
      %s201 = scalar_lea.vmem %s3, %s200
      %v203 = vld [vmem:[%s0] sm:$0xff]
      %v204 = vld [vmem:[%s0 + $0x8] sm:$0xff]
      %v205 = vld [vmem:[%s0 + $0x10] sm:$0xff]
      %v206 = vld [vmem:[%s0 + $0x18] sm:$0xff]
      %v207 = vld [vmem:[%s0 + $0x20] sm:$0xff]
      %v208 = vld [vmem:[%s0 + $0x28] sm:$0xff]
      %v209 = vpack.c.bf16 %v204, %v203
      %v210 = vpack.c.bf16 %v206, %v205
      %v211 = vpack.c.bf16 %v208, %v207
      %v212 = vld [vmem:[%s1] sm:$0xff]
      %v213 = vld [vmem:[%s1 + $0x8] sm:$0xff]
      %v214 = vld [vmem:[%s1 + $0x10] sm:$0xff]
      %v215 = vld [vmem:[%s1 + $0x18] sm:$0xff]
      %v216 = vld [vmem:[%s1 + $0x20] sm:$0xff]
      %v217 = vld [vmem:[%s1 + $0x28] sm:$0xff]
      %v218 = vld [vmem:[%s193] sm:$0xff]
      %v219 = vld [vmem:[%s193 + $0x8] sm:$0xff]
      %v220 = vld [vmem:[%s193 + $0x10] sm:$0xff]
      %v221 = vld [vmem:[%s193 + $0x18] sm:$0xff]
      %v222 = vpack.c.bf16 %v219, %v218
      %v223 = vpack.c.bf16 %v221, %v220
      %225 = vset.pattern.permute.xlu0 0
      %226 = vperm.xlu0 %225, %v212
      %v227 = vpop.permute.xlu0 %226
      %230 = vset.pattern.permute.xlu0 0
      %231 = vperm.xlu0 %230, %v213
      %v232 = vpop.permute.xlu0 %231
      %235 = vset.pattern.permute.xlu0 0
      %236 = vperm.xlu0 %235, %v214
      %v237 = vpop.permute.xlu0 %236
      %240 = vset.pattern.permute.xlu0 0
      %241 = vperm.xlu0 %240, %v215
      %v242 = vpop.permute.xlu0 %241
      %245 = vset.pattern.permute.xlu0 0
      %246 = vperm.xlu0 %245, %v216
      %v247 = vpop.permute.xlu0 %246
      %250 = vset.pattern.permute.xlu0 0
      %251 = vperm.xlu0 %250, %v217
      %v252 = vpop.permute.xlu0 %251
      %vm254 = vcmask 261120
      %v256 = vsel %vm254, %v209, 0
      %v259 = vsel %vm254, %v210, 0
      %v262 = vsel %vm254, %v211, 0
      %264 = vmatprep.subr.bf16.mxu0 0
      %265 = vmatpush1.bf16.msra.mxu0 %v222
      %266 = vmatprep.subr.bf16.mxu0 0
      %267 = vmatpush1.bf16.msra.mxu0 %v223
      %268 = vmatprep.subr.bf16.mxu0 0
      %269 = vmatpush1.bf16.msra.mxu0 0
      %270 = vmatprep.subr.bf16.mxu0 0
      %271 = vmatpush1.bf16.msra.mxu0 0
      %272 = vmatprep.subr.bf16.mxu0 0
      %273 = vmatpush1.bf16.msra.mxu0 0
      %274 = vmatprep.subr.bf16.mxu0 0
      %275 = vmatpush1.bf16.msra.mxu0 0
      %276 = vmatprep.subr.bf16.mxu0 0
      %277 = vmatpush1.bf16.msra.mxu0 0
      %278 = vmatprep.subr.bf16.mxu0 0
      %279 = vmatpush1.bf16.msra.mxu0 0
      %280 = vmatprep.subr.bf16.mxu0 0
      %281 = vmatpush1.bf16.msra.mxu0 0
      %282 = vmatprep.subr.bf16.mxu0 0
      %283 = vmatpush1.bf16.msra.mxu0 0
      %284 = vmatprep.subr.bf16.mxu0 0
      %285 = vmatpush1.bf16.msra.mxu0 0
      %286 = vmatprep.subr.bf16.mxu0 0
      %287 = vmatpush1.bf16.msra.mxu0 0
      %288 = vmatprep.subr.bf16.mxu0 0
      %289 = vmatpush1.bf16.msra.mxu0 0
      %290 = vmatprep.subr.bf16.mxu0 0
      %291 = vmatpush1.bf16.msra.mxu0 0
      %292 = vmatprep.subr.bf16.mxu0 0
      %293 = vmatpush1.bf16.msra.mxu0 0
      %294 = vmatprep.subr.bf16.mxu0 0
      %295 = vmatpush1.bf16.msra.mxu0 0
      %296 = vmatprep.mubr.bf16.mxu0 0
      %297 = vmatmul.mubr.bf16.gmra.mrb[0].mxu0 %v256
      %v298 = vpop.f32.mrb[0].mxu0
      %v299 = vadd.f32 %v227, %v298
      %v300 = vpop.f32.mrb[0].mxu0
      %v301 = vpop.f32.mrb[0].mxu0
      %v302 = vadd.f32 %v232, %v301
      %v303 = vpop.f32.mrb[0].mxu0
      %304 = vmatprep.mubr.bf16.mxu0 0
      %305 = vmatmul.mubr.bf16.gmra.mrb[0].mxu0 %v259
      %v306 = vpop.f32.mrb[0].mxu0
      %v307 = vadd.f32 %v237, %v306
      %v308 = vpop.f32.mrb[0].mxu0
      %v309 = vpop.f32.mrb[0].mxu0
      %v310 = vadd.f32 %v242, %v309
      %v311 = vpop.f32.mrb[0].mxu0
      %312 = vmatprep.mubr.bf16.mxu0 0
      %313 = vmatmul.mubr.bf16.gmra.mrb[0].mxu0 %v262
      %v314 = vpop.f32.mrb[0].mxu0
      %v315 = vadd.f32 %v247, %v314
      %v316 = vpop.f32.mrb[0].mxu0
      %v317 = vpop.f32.mrb[0].mxu0
      %v318 = vadd.f32 %v252, %v317
      %v319 = vpop.f32.mrb[0].mxu0
      %320 = vdwg.mxu0
      %vm321 = vcmask 130048
      %322 = vst.msk [vmem:[%s201] sm:$0xff] %vm321, %v299
      %323 = vst.msk [vmem:[%s201 + $0x8] sm:$0xff] %vm321, %v302
      %324 = vst.msk [vmem:[%s201 + $0x10] sm:$0xff] %vm321, %v307
      %325 = vst.msk [vmem:[%s201 + $0x18] sm:$0xff] %vm321, %v310
      %326 = vst.msk [vmem:[%s201 + $0x20] sm:$0xff] %vm321, %v315
      %327 = vst.msk [vmem:[%s201 + $0x28] sm:$0xff] %vm321, %v318
      %p328 = scmp.lt.s32.totalorder %s18, 1
      %s329 = scalar_select %p328, %s18, 1
      %p330 = scmp.lt.s32.totalorder %s19, 0
      %s331 = scalar_select %p330, %s19, 0
      %s332 = smul.addr %s329, 6
      %s333 = sadd.s32 %s331, %s332
      %s334 = smul.addr %s333, 8
      %s335 = scalar_lea.vmem %s3, %s334
      // Predicated region
      $region33: #{tpu_custom_call.1} parent=31 // pred_check
        %p336 = pneg %p116
      $region34: #{tpu_custom_call.1} parent=31 // pred_check_branch
        %338 = sbr.rel (%p336) target = $region36
      $region35: #{tpu_custom_call.1} parent=31 // pred_region
        _
      $region36: #{tpu_custom_call.1} parent=31 // pred_fallthru
        _
    $region32: #{tpu_custom_call.1} parent=5 // pred_fallthru
      _
    %p339 = scmp.le.s32.totalorder 2, %s9
    // Predicated region
    $region37: #{tpu_custom_call.1} parent=5 // pred_check
      %p340 = pneg %p339
    $region38: #{tpu_custom_call.1} parent=5 // pred_check_branch
      %342 = sbr.rel (%p340) target = $region40
    $region39: #{tpu_custom_call.1} parent=5 // pred_region
      %s343 = ssub.s32 %s9, 2
      // Predicated region
      $region41: #{tpu_custom_call.1} parent=39 // pred_check
        %p344 = pneg %p122
      $region42: #{tpu_custom_call.1} parent=39 // pred_check_branch
        %346 = sbr.rel (%p344) target = $region44
      $region43: #{tpu_custom_call.1} parent=39 // pred_region
        %p347 = scmp.lt.s32.totalorder %s20, 1
        %s348 = scalar_select %p347, %s20, 1
        %p349 = scmp.lt.s32.totalorder %s21, 0
        %s350 = scalar_select %p349, %s21, 0
        %s351 = smul.addr %s348, 6
        %s352 = sadd.s32 %s350, %s351
        %s353 = smul.addr %s352, 8
        %s354 = scalar_lea.vmem %s3, %s353
      $region44: #{tpu_custom_call.1} parent=39 // pred_fallthru
        _
    $region40: #{tpu_custom_call.1} parent=5 // pred_fallthru
      _
  $region6: #{tpu_custom_call.1} parent=0 // loop_footer
    %s13 = sadd.s32 1, %s9
  $region7: #{tpu_custom_call.1} parent=0 // loop_footer_branch
    %8 = sbr.rel target = $region3
  $region8: #{tpu_custom_call.1} parent=0 // loop_exit
    _

</llo_original>
